<compile_context>
chip_gen: v5e
topology: v5e:2x2
jax: 0.10.0
libtpu: 0.0.40
codegen_flags: <defaults>
</compile_context>

<pallas_src>
import jax
import jax.numpy as jnp
from jax import lax
from jax.experimental import pallas as pl
from jax.experimental.pallas import tpu as pltpu

# ---------------- configuration (mirrors _InvariantEmbedding.__init__) -------
D_INV = 32
N_ATOM_TYPES = 8
N_BOND_TYPES = 5
EMB_SIZE = 16
N_CHARGE_TYPES = 6
N_RBF = 8
RBF_CUTOFF = 5.0
SELF_COND = True
MAX_SIZE = 16

# n_embeddings = 1 + 1 (max_size) + 1 (charges) = 3 ; self_cond adds n_atom_types
ATOM_IN_FEATS = EMB_SIZE * 3 + N_ATOM_TYPES           # 56
# d_bond_proj_in = emb_size + n_bond_types (self_cond) + n_rbf
BOND_PROJ_IN = EMB_SIZE + N_BOND_TYPES + N_RBF        # 29

B, N = 2, 8
BN = B * N

# TODO(synk): the nn.Module's runtime ValueError checks (self_cond/charge arg
# validation) are config-time Python checks and are not reproduced in-kernel.


# ----------------------------- fused Pallas kernel ----------------------------
def _fused_kernel(
    # atom path
    types_ref, charges_ref, mask_ref, cond_t_ref,
    wt_ref, wc_ref, ws_ref, wcond_ref, b1_ref, w2_ref, b2_ref,
    # edge path
    cxi_ref, cyi_ref, czi_ref, cxj_ref, cyj_ref, czj_ref,
    bonds_ref, bond_pat_ref, cond_b_ref,
    rep_ref, centres_ref, scale_ref,
    wb_ref, wcb_ref, wrbf_ref, bp_ref,
    # outputs
    atoms_out_ref, edges_out_ref,
):
    f32 = jnp.float32
    bn = types_ref.shape[0]                    # B*N rows for both paths
    n_at = wt_ref.shape[0]
    n_ch = wc_ref.shape[0]
    n_sz = ws_ref.shape[0]

    # ---------------- atoms: folded embeddings + 2-layer MLP ----------------
    # one-hot "lookups" (exact for valid integer indices)
    t_oh = (types_ref[...] ==
            lax.broadcasted_iota(jnp.int32, (bn, n_at), 1)).astype(f32)
    c_oh = (charges_ref[...] ==
            lax.broadcasted_iota(jnp.int32, (bn, n_ch), 1)).astype(f32)
    # size embedding index = atom_mask.sum(-1), already row-replicated in mask_ref
    n_atoms = jnp.sum(mask_ref[...], axis=-1, keepdims=True)          # (bn, 1) int
    s_oh = (n_atoms ==
            lax.broadcasted_iota(jnp.int32, (bn, n_sz), 1)).astype(f32)

    # h = concat([t_emb, c_emb, s_emb, cond]) @ w1 + b1, with tables folded into w1
    h = (jnp.dot(t_oh, wt_ref[...], preferred_element_type=f32)
         + jnp.dot(c_oh, wc_ref[...], preferred_element_type=f32)
         + jnp.dot(s_oh, ws_ref[...], preferred_element_type=f32)
         + jnp.dot(cond_t_ref[...], wcond_ref[...], preferred_element_type=f32)
         + b1_ref[...])
    h = h * jax.nn.sigmoid(h)                                          # SiLU
    atoms_out_ref[...] = (jnp.dot(h, w2_ref[...], preferred_element_type=f32)
                          + b2_ref[...])

    # ---------------- edges: distances + RBF + folded bond projection --------
    # per-component pairwise differences, all in (bn, N) 2-D layout
    dx = cxi_ref[...] - cxj_ref[...]
    dy = cyi_ref[...] - cyj_ref[...]
    dz = czi_ref[...] - czj_ref[...]
    d2 = dx * dx + dy * dy + dz * dz                                   # (bn, N)
    dist = jnp.minimum(jnp.sqrt(d2), RBF_CUTOFF)                       # clamp(max=cutoff)

    # replicate each distance into its n_rbf-wide lane block via a matmul,
    # then evaluate the gaussians lane-dense:  rbf[i, j*n_rbf + r]
    dist_rep = jnp.dot(dist, rep_ref[...], preferred_element_type=f32)  # (bn, N*n_rbf)
    delta = dist_rep - centres_ref[...]
    rbf = jnp.exp(scale_ref[...] * delta * delta)                       # scale = -0.5/width^2

    # bond-type one-hot in block layout:  b_oh[i, j*n_bd + v] = (bonds[i,j] == v)
    b_oh = (bonds_ref[...] == bond_pat_ref[...]).astype(f32)            # (bn, N*n_bd)

    # edges[i, j*emb : (j+1)*emb] = [bond_emb | cond_bonds | rbf] @ bond_w + bond_b
    # realized with block-diagonal folded weights -> lane-dense (bn, N*emb) output
    edges = (jnp.dot(b_oh, wb_ref[...], preferred_element_type=f32)
             + jnp.dot(cond_b_ref[...], wcb_ref[...], preferred_element_type=f32)
             + jnp.dot(rbf, wrbf_ref[...], preferred_element_type=f32)
             + bp_ref[...])
    edges_out_ref[...] = edges


# ----------------------------- wrapper ----------------------------------------
_VMEM = pl.BlockSpec(memory_space=pltpu.MemorySpace.VMEM)


@jax.jit
def invariant_embedding(folded, coords, atom_types, bond_types, atom_mask,
                        atom_charges, cond_types, cond_bonds):
    b, n = atom_types.shape
    bn = b * n

    # layout plumbing in the wrapper (free / cheap XLA ops) so the kernel sees
    # only flat, lane-friendly 2-D operands
    x, y, z = coords[..., 0], coords[..., 1], coords[..., 2]             # (b, n) each
    args = (
        # atoms
        atom_types.reshape(bn, 1).astype(jnp.int32),
        atom_charges.reshape(bn, 1).astype(jnp.int32),
        jnp.repeat(atom_mask.astype(jnp.int32), n, axis=0),              # (bn, n)
        cond_types.reshape(bn, N_ATOM_TYPES).astype(jnp.float32),
        folded["wt"], folded["wc"], folded["ws"], folded["wcond"],
        folded["b1"], folded["w2"], folded["b2"],
        # edges
        x.reshape(bn, 1), y.reshape(bn, 1), z.reshape(bn, 1),            # coord of row atom
        jnp.repeat(x, n, axis=0), jnp.repeat(y, n, axis=0),              # coords of all atoms
        jnp.repeat(z, n, axis=0),                                        #   in the same batch
        jnp.repeat(bond_types.reshape(bn, n).astype(jnp.int32),
                   N_BOND_TYPES, axis=1),                                # (bn, n*n_bd)
        folded["bond_pat"],
        cond_bonds.reshape(bn, n * N_BOND_TYPES).astype(jnp.float32),
        folded["rep_rbf"], folded["centres_rep"], folded["scale_rep"],
        folded["wb_blk"], folded["wcb_blk"], folded["wrbf_blk"], folded["bp_rep"],
    )

    atoms_flat, edges_flat = pl.pallas_call(
        _fused_kernel,
        out_shape=(jax.ShapeDtypeStruct((bn, D_INV), jnp.float32),
                   jax.ShapeDtypeStruct((bn, n * EMB_SIZE), jnp.float32)),
        in_specs=[_VMEM] * len(args),
        out_specs=(_VMEM, _VMEM),
        cost_estimate=pl.CostEstimate(flops=700_000, transcendentals=1_600,
                                      bytes_accessed=120_000),
    )(*args)

    # free reshapes (same row-major linear order)
    return (atoms_flat.reshape(b, n, D_INV),
            edges_flat.reshape(b, n, n, EMB_SIZE))


# ----------------------------- params, folding & reference ---------------------
def init_params(key):
    ks = jax.random.split(key, 10)

    def rnd(k, shape, scale):
        return jax.random.normal(k, shape, jnp.float32) * scale

    return {
        "atom_type_emb": rnd(ks[0], (N_ATOM_TYPES, EMB_SIZE), 1.0),
        "atom_charge_emb": rnd(ks[1], (N_CHARGE_TYPES, EMB_SIZE), 1.0),
        "size_emb": rnd(ks[2], (MAX_SIZE, EMB_SIZE), 1.0),
        "bond_emb": rnd(ks[3], (N_BOND_TYPES, EMB_SIZE), 1.0),
        # Linear weights stored as (in, out)  (== torch weight.T)
        "atom_w1": rnd(ks[4], (ATOM_IN_FEATS, D_INV), ATOM_IN_FEATS ** -0.5),
        "atom_b1": rnd(ks[5], (1, D_INV), 0.01),
        "atom_w2": rnd(ks[6], (D_INV, D_INV), D_INV ** -0.5),
        "atom_b2": rnd(ks[7], (1, D_INV), 0.01),
        "bond_w": rnd(ks[8], (BOND_PROJ_IN, EMB_SIZE), BOND_PROJ_IN ** -0.5),
        "bond_b": rnd(ks[9], (1, EMB_SIZE), 0.01),
        # RadialBasisFeatures: centres = linspace(0, cutoff, n_rbf); widths = step
        "rbf_centres": jnp.linspace(0.0, RBF_CUTOFF, N_RBF,
                                    dtype=jnp.float32).reshape(1, N_RBF),
        "rbf_widths": jnp.full((1, N_RBF), RBF_CUTOFF / (N_RBF - 1), jnp.float32),
    }


def fold_params(p):
    """Fold embedding tables into the downstream Linear weights (done once at init).
    Exact: the first Linear is linear in the concatenated features."""
    e = EMB_SIZE
    w1 = p["atom_w1"]                                    # (56, 32)
    bw = p["bond_w"]                                     # (29, 16)
    wb = p["bond_emb"] @ bw[0:e]                         # (n_bd, emb)
    wcb = bw[e:e + N_BOND_TYPES]                         # (n_bd, emb)
    wrbf = bw[e + N_BOND_TYPES:]                         # (n_rbf, emb)

    def blockdiag(w):                                    # (k, o) -> (N*k, N*o)
        k, o = w.shape
        m = jnp.zeros((N * k, N * o), jnp.float32)
        for j in range(N):
            m = m.at[j * k:(j + 1) * k, j * o:(j + 1) * o].set(w)
        return m

    return {
        # atom path
        "wt": p["atom_type_emb"] @ w1[0:e],              # (n_atom_types, d_inv)
        "wc": p["atom_charge_emb"] @ w1[e:2 * e],        # (n_charge_types, d_inv)
        "ws": p["size_emb"] @ w1[2 * e:3 * e],           # (max_size, d_inv)
        "wcond": w1[3 * e:],                             # (n_atom_types, d_inv)
        "b1": p["atom_b1"], "w2": p["atom_w2"], "b2": p["atom_b2"],
        # edge path (block-diagonal over the N neighbour positions -> lane-dense out)
        "wb_blk": blockdiag(wb),                         # (N*n_bd, N*emb) = (40, 128)
        "wcb_blk": blockdiag(wcb),                       # (40, 128)
        "wrbf_blk": blockdiag(wrbf),                     # (N*n_rbf, N*emb) = (64, 128)
        "bp_rep": jnp.tile(p["bond_b"], (1, N)),         # (1, 128)
        "rep_rbf": jnp.repeat(jnp.eye(N, dtype=jnp.float32), N_RBF, axis=1),  # (8, 64)
        "centres_rep": jnp.tile(p["rbf_centres"], (1, N)),                    # (1, 64)
        "scale_rep": jnp.tile(-0.5 / (p["rbf_widths"] ** 2), (1, N)),          # (1, 64)
        "bond_pat": jnp.tile(jnp.arange(N_BOND_TYPES, dtype=jnp.int32),
                             N).reshape(1, N * N_BOND_TYPES),                  # (1, 40)
    }


def reference(params, coords, atom_types, bond_types, atom_mask,
              atom_charges, cond_types, cond_bonds):
    b, n = atom_types.shape
    t = params["atom_type_emb"][atom_types]
    c = params["atom_charge_emb"][atom_charges]
    n_atoms = atom_mask.sum(-1)
    s = jnp.broadcast_to(params["size_emb"][n_atoms][:, None, :], (b, n, EMB_SIZE))
    feats = jnp.concatenate([t, c, s, cond_types], -1)
    h = feats @ params["atom_w1"] + params["atom_b1"]
    invs = jax.nn.silu(h) @ params["atom_w2"] + params["atom_b2"]

    e = params["bond_emb"][bond_types]
    diff = coords[:, :, None, :] - coords[:, None, :, :]
    dist = jnp.minimum(jnp.sqrt((diff ** 2).sum(-1)), RBF_CUTOFF)
    rbf = jnp.exp(-0.5 * ((dist[..., None] -
                           params["rbf_centres"].reshape(1, 1, 1, -1)) /
                          params["rbf_widths"].reshape(1, 1, 1, -1)) ** 2)
    efeats = jnp.concatenate([e, cond_bonds, rbf], -1)
    edges = efeats @ params["bond_w"] + params["bond_b"]
    return invs, edges


# ----------------------------- main ---------------------------------------------
if __name__ == "__main__":
    key = jax.random.PRNGKey(0)
    kp, kc, kt, kb, km, kq, kct, kcb = jax.random.split(key, 8)
    params = init_params(kp)
    folded = fold_params(params)

    coords = jax.random.normal(kc, (B, N, 3), jnp.float32) * 2.0
    atom_types = jax.random.randint(kt, (B, N), 0, N_ATOM_TYPES, jnp.int32)
    bond_types = jax.random.randint(kb, (B, N, N), 0, N_BOND_TYPES, jnp.int32)
    atom_mask = (jax.random.uniform(km, (B, N)) > 0.25).astype(jnp.int32)
    atom_charges = jax.random.randint(kq, (B, N), 0, N_CHARGE_TYPES, jnp.int32)
    cond_types = jax.nn.one_hot(
        jax.random.randint(kct, (B, N), 0, N_ATOM_TYPES), N_ATOM_TYPES,
        dtype=jnp.float32)
    cond_bonds = jax.nn.one_hot(
        jax.random.randint(kcb, (B, N, N), 0, N_BOND_TYPES), N_BOND_TYPES,
        dtype=jnp.float32)

    invs, edges = invariant_embedding(folded, coords, atom_types, bond_types,
                                      atom_mask, atom_charges, cond_types,
                                      cond_bonds)
    jax.block_until_ready((invs, edges))

    ref_invs, ref_edges = reference(params, coords, atom_types, bond_types,
                                    atom_mask, atom_charges, cond_types,
                                    cond_bonds)
    assert invs.shape == (B, N, D_INV)
    assert edges.shape == (B, N, N, EMB_SIZE)
    assert jnp.allclose(invs, ref_invs, atol=1e-3, rtol=1e-3)
    assert jnp.allclose(edges, ref_edges, atol=1e-3, rtol=1e-3)
    print("KERNEL_OK")
</pallas_src>

<mosaic_0001>
module attributes {stable_mosaic.version = 11 : i64} {
  func.func @_fused_kernel(%arg0: memref<16x1xi32, #tpu.memory_space<vmem>>, %arg1: memref<16x1xi32, #tpu.memory_space<vmem>>, %arg2: memref<16x8xi32, #tpu.memory_space<vmem>>, %arg3: memref<16x8xf32, #tpu.memory_space<vmem>>, %arg4: memref<8x32xf32, #tpu.memory_space<vmem>>, %arg5: memref<6x32xf32, #tpu.memory_space<vmem>>, %arg6: memref<16x32xf32, #tpu.memory_space<vmem>>, %arg7: memref<8x32xf32, #tpu.memory_space<vmem>>, %arg8: memref<1x32xf32, #tpu.memory_space<vmem>>, %arg9: memref<32x32xf32, #tpu.memory_space<vmem>>, %arg10: memref<1x32xf32, #tpu.memory_space<vmem>>, %arg11: memref<16x1xf32, #tpu.memory_space<vmem>>, %arg12: memref<16x1xf32, #tpu.memory_space<vmem>>, %arg13: memref<16x1xf32, #tpu.memory_space<vmem>>, %arg14: memref<16x8xf32, #tpu.memory_space<vmem>>, %arg15: memref<16x8xf32, #tpu.memory_space<vmem>>, %arg16: memref<16x8xf32, #tpu.memory_space<vmem>>, %arg17: memref<16x40xi32, #tpu.memory_space<vmem>>, %arg18: memref<1x40xi32, #tpu.memory_space<vmem>>, %arg19: memref<16x40xf32, #tpu.memory_space<vmem>>, %arg20: memref<8x64xf32, #tpu.memory_space<vmem>>, %arg21: memref<1x64xf32, #tpu.memory_space<vmem>>, %arg22: memref<1x64xf32, #tpu.memory_space<vmem>>, %arg23: memref<40x128xf32, #tpu.memory_space<vmem>>, %arg24: memref<40x128xf32, #tpu.memory_space<vmem>>, %arg25: memref<64x128xf32, #tpu.memory_space<vmem>>, %arg26: memref<1x128xf32, #tpu.memory_space<vmem>>, %arg27: memref<16x32xf32, #tpu.memory_space<vmem>>, %arg28: memref<16x128xf32, #tpu.memory_space<vmem>>) attributes {dimension_semantics = [], scalar_prefetch = 0 : i64, scratch_operands = 0 : i64, tpu.core_type = #tpu.core_type<tc>} {
    %c0 = arith.constant 0 : index
    %c0_0 = arith.constant 0 : index
    %0 = vector.load %arg0[%c0, %c0_0] : memref<16x1xi32, #tpu.memory_space<vmem>>, vector<16x1xi32>
    %1 = tpu.iota {dimensions = array<i32: 1>} : vector<16x8xi32>
    %2 = vector.broadcast %0 : vector<16x1xi32> to vector<16x8xi32>
    %3 = arith.cmpi eq, %2, %1 : vector<16x8xi32>
    %4 = arith.extui %3 : vector<16x8xi1> to vector<16x8xi32>
    %5 = arith.sitofp %4 : vector<16x8xi32> to vector<16x8xf32>
    %c0_1 = arith.constant 0 : index
    %c0_2 = arith.constant 0 : index
    %6 = vector.load %arg1[%c0_1, %c0_2] : memref<16x1xi32, #tpu.memory_space<vmem>>, vector<16x1xi32>
    %7 = tpu.iota {dimensions = array<i32: 1>} : vector<16x6xi32>
    %8 = vector.broadcast %6 : vector<16x1xi32> to vector<16x6xi32>
    %9 = arith.cmpi eq, %8, %7 : vector<16x6xi32>
    %10 = arith.extui %9 : vector<16x6xi1> to vector<16x6xi32>
    %11 = arith.sitofp %10 : vector<16x6xi32> to vector<16x6xf32>
    %c0_3 = arith.constant 0 : index
    %c0_4 = arith.constant 0 : index
    %12 = vector.load %arg2[%c0_3, %c0_4] : memref<16x8xi32, #tpu.memory_space<vmem>>, vector<16x8xi32>
    %cst = arith.constant dense<0> : vector<16xi32>
    %13 = vector.multi_reduction <add>, %12, %cst [1] : vector<16x8xi32> to vector<16xi32>
    %14 = vector.shape_cast %13 : vector<16xi32> to vector<16x1xi32>
    %15 = tpu.iota {dimensions = array<i32: 1>} : vector<16x16xi32>
    %16 = vector.broadcast %14 : vector<16x1xi32> to vector<16x16xi32>
    %17 = arith.cmpi eq, %16, %15 : vector<16x16xi32>
    %18 = arith.extui %17 : vector<16x16xi1> to vector<16x16xi32>
    %19 = arith.sitofp %18 : vector<16x16xi32> to vector<16x16xf32>
    %c0_5 = arith.constant 0 : index
    %c0_6 = arith.constant 0 : index
    %20 = vector.load %arg4[%c0_5, %c0_6] : memref<8x32xf32, #tpu.memory_space<vmem>>, vector<8x32xf32>
    %cst_7 = arith.constant dense<0.000000e+00> : vector<16x32xf32>
    %21 = tpu.matmul %5, %20, %cst_7 {dimension_numbers = #tpu.dot_dimension_numbers<[1], [0], [0], [1], [0, 0, 1, 1], [], []>} : vector<16x8xf32>, vector<8x32xf32>, vector<16x32xf32> -> vector<16x32xf32>
    %c0_8 = arith.constant 0 : index
    %c0_9 = arith.constant 0 : index
    %22 = vector.load %arg5[%c0_8, %c0_9] : memref<6x32xf32, #tpu.memory_space<vmem>>, vector<6x32xf32>
    %cst_10 = arith.constant dense<0.000000e+00> : vector<16x32xf32>
    %23 = tpu.matmul %11, %22, %cst_10 {dimension_numbers = #tpu.dot_dimension_numbers<[1], [0], [0], [1], [0, 0, 1, 1], [], []>} : vector<16x6xf32>, vector<6x32xf32>, vector<16x32xf32> -> vector<16x32xf32>
    %24 = arith.addf %21, %23 : vector<16x32xf32>
    %c0_11 = arith.constant 0 : index
    %c0_12 = arith.constant 0 : index
    %25 = vector.load %arg6[%c0_11, %c0_12] : memref<16x32xf32, #tpu.memory_space<vmem>>, vector<16x32xf32>
    %cst_13 = arith.constant dense<0.000000e+00> : vector<16x32xf32>
    %26 = tpu.matmul %19, %25, %cst_13 {dimension_numbers = #tpu.dot_dimension_numbers<[1], [0], [0], [1], [0, 0, 1, 1], [], []>} : vector<16x16xf32>, vector<16x32xf32>, vector<16x32xf32> -> vector<16x32xf32>
    %27 = arith.addf %24, %26 : vector<16x32xf32>
    %c0_14 = arith.constant 0 : index
    %c0_15 = arith.constant 0 : index
    %28 = vector.load %arg3[%c0_14, %c0_15] : memref<16x8xf32, #tpu.memory_space<vmem>>, vector<16x8xf32>
    %c0_16 = arith.constant 0 : index
    %c0_17 = arith.constant 0 : index
    %29 = vector.load %arg7[%c0_16, %c0_17] : memref<8x32xf32, #tpu.memory_space<vmem>>, vector<8x32xf32>
    %cst_18 = arith.constant dense<0.000000e+00> : vector<16x32xf32>
    %30 = tpu.matmul %28, %29, %cst_18 {dimension_numbers = #tpu.dot_dimension_numbers<[1], [0], [0], [1], [0, 0, 1, 1], [], []>} : vector<16x8xf32>, vector<8x32xf32>, vector<16x32xf32> -> vector<16x32xf32>
    %31 = arith.addf %27, %30 : vector<16x32xf32>
    %c0_19 = arith.constant 0 : index
    %c0_20 = arith.constant 0 : index
    %32 = vector.load %arg8[%c0_19, %c0_20] : memref<1x32xf32, #tpu.memory_space<vmem>>, vector<1x32xf32>
    %33 = vector.broadcast %32 : vector<1x32xf32> to vector<16x32xf32>
    %34 = arith.addf %31, %33 : vector<16x32xf32>
    %35 = arith.negf %34 : vector<16x32xf32>
    %36 = math.exp %35 : vector<16x32xf32>
    %cst_21 = arith.constant 1.000000e+00 : f32
    %37 = vector.broadcast %cst_21 : f32 to vector<16x32xf32>
    %38 = arith.addf %37, %36 : vector<16x32xf32>
    %39 = arith.divf %37, %38 : vector<16x32xf32>
    %40 = arith.mulf %34, %39 : vector<16x32xf32>
    %c0_22 = arith.constant 0 : index
    %c0_23 = arith.constant 0 : index
    %41 = vector.load %arg9[%c0_22, %c0_23] : memref<32x32xf32, #tpu.memory_space<vmem>>, vector<32x32xf32>
    %cst_24 = arith.constant dense<0.000000e+00> : vector<16x32xf32>
    %42 = tpu.matmul %40, %41, %cst_24 {dimension_numbers = #tpu.dot_dimension_numbers<[1], [0], [0], [1], [0, 0, 1, 1], [], []>} : vector<16x32xf32>, vector<32x32xf32>, vector<16x32xf32> -> vector<16x32xf32>
    %c0_25 = arith.constant 0 : index
    %c0_26 = arith.constant 0 : index
    %43 = vector.load %arg10[%c0_25, %c0_26] : memref<1x32xf32, #tpu.memory_space<vmem>>, vector<1x32xf32>
    %44 = vector.broadcast %43 : vector<1x32xf32> to vector<16x32xf32>
    %45 = arith.addf %42, %44 : vector<16x32xf32>
    %c0_27 = arith.constant 0 : index
    %c0_28 = arith.constant 0 : index
    %46 = vector.load %arg27[%c0_27, %c0_28] : memref<16x32xf32, #tpu.memory_space<vmem>>, vector<16x32xf32>
    tpu.vector_store %arg27[%c0_27, %c0_28], %45 {strides = array<i32>} : memref<16x32xf32, #tpu.memory_space<vmem>>, vector<16x32xf32>,
    %c0_29 = arith.constant 0 : index
    %c0_30 = arith.constant 0 : index
    %47 = vector.load %arg11[%c0_29, %c0_30] : memref<16x1xf32, #tpu.memory_space<vmem>>, vector<16x1xf32>
    %c0_31 = arith.constant 0 : index
    %c0_32 = arith.constant 0 : index
    %48 = vector.load %arg14[%c0_31, %c0_32] : memref<16x8xf32, #tpu.memory_space<vmem>>, vector<16x8xf32>
    %49 = vector.broadcast %47 : vector<16x1xf32> to vector<16x8xf32>
    %50 = arith.subf %49, %48 : vector<16x8xf32>
    %c0_33 = arith.constant 0 : index
    %c0_34 = arith.constant 0 : index
    %51 = vector.load %arg12[%c0_33, %c0_34] : memref<16x1xf32, #tpu.memory_space<vmem>>, vector<16x1xf32>
    %c0_35 = arith.constant 0 : index
    %c0_36 = arith.constant 0 : index
    %52 = vector.load %arg15[%c0_35, %c0_36] : memref<16x8xf32, #tpu.memory_space<vmem>>, vector<16x8xf32>
    %53 = vector.broadcast %51 : vector<16x1xf32> to vector<16x8xf32>
    %54 = arith.subf %53, %52 : vector<16x8xf32>
    %c0_37 = arith.constant 0 : index
    %c0_38 = arith.constant 0 : index
    %55 = vector.load %arg13[%c0_37, %c0_38] : memref<16x1xf32, #tpu.memory_space<vmem>>, vector<16x1xf32>
    %c0_39 = arith.constant 0 : index
    %c0_40 = arith.constant 0 : index
    %56 = vector.load %arg16[%c0_39, %c0_40] : memref<16x8xf32, #tpu.memory_space<vmem>>, vector<16x8xf32>
    %57 = vector.broadcast %55 : vector<16x1xf32> to vector<16x8xf32>
    %58 = arith.subf %57, %56 : vector<16x8xf32>
    %59 = arith.mulf %50, %50 : vector<16x8xf32>
    %60 = arith.mulf %54, %54 : vector<16x8xf32>
    %61 = arith.addf %59, %60 : vector<16x8xf32>
    %62 = arith.mulf %58, %58 : vector<16x8xf32>
    %63 = arith.addf %61, %62 : vector<16x8xf32>
    %64 = math.sqrt %63 : vector<16x8xf32>
    %cst_41 = arith.constant 5.000000e+00 : f32
    %65 = vector.broadcast %cst_41 : f32 to vector<16x8xf32>
    %66 = arith.minimumf %64, %65 : vector<16x8xf32>
    %c0_42 = arith.constant 0 : index
    %c0_43 = arith.constant 0 : index
    %67 = vector.load %arg20[%c0_42, %c0_43] : memref<8x64xf32, #tpu.memory_space<vmem>>, vector<8x64xf32>
    %cst_44 = arith.constant dense<0.000000e+00> : vector<16x64xf32>
    %68 = tpu.matmul %66, %67, %cst_44 {dimension_numbers = #tpu.dot_dimension_numbers<[1], [0], [0], [1], [0, 0, 1, 1], [], []>} : vector<16x8xf32>, vector<8x64xf32>, vector<16x64xf32> -> vector<16x64xf32>
    %c0_45 = arith.constant 0 : index
    %c0_46 = arith.constant 0 : index
    %69 = vector.load %arg21[%c0_45, %c0_46] : memref<1x64xf32, #tpu.memory_space<vmem>>, vector<1x64xf32>
    %70 = vector.broadcast %69 : vector<1x64xf32> to vector<16x64xf32>
    %71 = arith.subf %68, %70 : vector<16x64xf32>
    %c0_47 = arith.constant 0 : index
    %c0_48 = arith.constant 0 : index
    %72 = vector.load %arg22[%c0_47, %c0_48] : memref<1x64xf32, #tpu.memory_space<vmem>>, vector<1x64xf32>
    %73 = vector.broadcast %72 : vector<1x64xf32> to vector<16x64xf32>
    %74 = arith.mulf %73, %71 : vector<16x64xf32>
    %75 = arith.mulf %74, %71 : vector<16x64xf32>
    %76 = math.exp %75 : vector<16x64xf32>
    %c0_49 = arith.constant 0 : index
    %c0_50 = arith.constant 0 : index
    %77 = vector.load %arg17[%c0_49, %c0_50] : memref<16x40xi32, #tpu.memory_space<vmem>>, vector<16x40xi32>
    %c0_51 = arith.constant 0 : index
    %c0_52 = arith.constant 0 : index
    %78 = vector.load %arg18[%c0_51, %c0_52] : memref<1x40xi32, #tpu.memory_space<vmem>>, vector<1x40xi32>
    %79 = vector.broadcast %78 : vector<1x40xi32> to vector<16x40xi32>
    %80 = arith.cmpi eq, %77, %79 : vector<16x40xi32>
    %81 = arith.extui %80 : vector<16x40xi1> to vector<16x40xi32>
    %82 = arith.sitofp %81 : vector<16x40xi32> to vector<16x40xf32>
    %c0_53 = arith.constant 0 : index
    %c0_54 = arith.constant 0 : index
    %83 = vector.load %arg23[%c0_53, %c0_54] : memref<40x128xf32, #tpu.memory_space<vmem>>, vector<40x128xf32>
    %cst_55 = arith.constant dense<0.000000e+00> : vector<16x128xf32>
    %84 = tpu.matmul %82, %83, %cst_55 {dimension_numbers = #tpu.dot_dimension_numbers<[1], [0], [0], [1], [0, 0, 1, 1], [], []>} : vector<16x40xf32>, vector<40x128xf32>, vector<16x128xf32> -> vector<16x128xf32>
    %c0_56 = arith.constant 0 : index
    %c0_57 = arith.constant 0 : index
    %85 = vector.load %arg19[%c0_56, %c0_57] : memref<16x40xf32, #tpu.memory_space<vmem>>, vector<16x40xf32>
    %c0_58 = arith.constant 0 : index
    %c0_59 = arith.constant 0 : index
    %86 = vector.load %arg24[%c0_58, %c0_59] : memref<40x128xf32, #tpu.memory_space<vmem>>, vector<40x128xf32>
    %cst_60 = arith.constant dense<0.000000e+00> : vector<16x128xf32>
    %87 = tpu.matmul %85, %86, %cst_60 {dimension_numbers = #tpu.dot_dimension_numbers<[1], [0], [0], [1], [0, 0, 1, 1], [], []>} : vector<16x40xf32>, vector<40x128xf32>, vector<16x128xf32> -> vector<16x128xf32>
    %88 = arith.addf %84, %87 : vector<16x128xf32>
    %c0_61 = arith.constant 0 : index
    %c0_62 = arith.constant 0 : index
    %89 = vector.load %arg25[%c0_61, %c0_62] : memref<64x128xf32, #tpu.memory_space<vmem>>, vector<64x128xf32>
    %cst_63 = arith.constant dense<0.000000e+00> : vector<16x128xf32>
    %90 = tpu.matmul %76, %89, %cst_63 {dimension_numbers = #tpu.dot_dimension_numbers<[1], [0], [0], [1], [0, 0, 1, 1], [], []>} : vector<16x64xf32>, vector<64x128xf32>, vector<16x128xf32> -> vector<16x128xf32>
    %91 = arith.addf %88, %90 : vector<16x128xf32>
    %c0_64 = arith.constant 0 : index
    %c0_65 = arith.constant 0 : index
    %92 = vector.load %arg26[%c0_64, %c0_65] : memref<1x128xf32, #tpu.memory_space<vmem>>, vector<1x128xf32>
    %93 = vector.broadcast %92 : vector<1x128xf32> to vector<16x128xf32>
    %94 = arith.addf %91, %93 : vector<16x128xf32>
    %c0_66 = arith.constant 0 : index
    %c0_67 = arith.constant 0 : index
    %95 = vector.load %arg28[%c0_66, %c0_67] : memref<16x128xf32, #tpu.memory_space<vmem>>, vector<16x128xf32>
    tpu.vector_store %arg28[%c0_66, %c0_67], %94 {strides = array<i32>} : memref<16x128xf32, #tpu.memory_space<vmem>>, vector<16x128xf32>,
    return
  }
}

</mosaic_0001>

<llo_original>
// kernel: squeeze.0
$region0: #{squeeze.0}
  %s0 = inlined_call_operand.vmem [shape: f32[2,8,1], index: 0, kind: input, shape index: {}]
  %s1 = inlined_call_operand.vmem [shape: f32[16,1], index: 1, kind: output, shape index: {}]
  $region1: #{squeeze.0} parent=0
    #allocation0 [shape = 'u8[4096]{0}', space=vmem, size = 0x1000, scoped, tag = 'scoped mem for input reshape']
    %s3 = ssub.s32 4, 1
    %v4 = vld [vmem:[%s0] sm:%s3]
    %5 = vst [vmem:[#allocation0] sm:%s3] %v4
    %v6 = vld [vmem:[#allocation0] sm:$0x3]
    %vm7 = vcmask 7168
    %8 = vst.msk [vmem:[%s1] ss:$8 sm:$0x3] %vm7, %v6
    %v9 = vld [vmem:[#allocation0] sm:$0x3]
    %10 = vrot.lane.b32.xlu0 %v9, 127
    %v11 = vpop.permute.xlu0 %10
    %vm12 = vcmask 7168
    %s13 = scalar_lea.vmem %s1, 1
    %14 = vst.msk [vmem:[%s13] ss:$8 sm:$0x3] %vm12, %v11
    %v15 = vld [vmem:[#allocation0] sm:$0x3]
    %16 = vrot.lane.b32.xlu0 %v15, 126
    %v17 = vpop.permute.xlu0 %16
    %vm18 = vcmask 7168
    %s19 = scalar_lea.vmem %s1, 2
    %20 = vst.msk [vmem:[%s19] ss:$8 sm:$0x3] %vm18, %v17
    %v21 = vld [vmem:[#allocation0] sm:$0x3]
    %22 = vrot.lane.b32.xlu0 %v21, 125
    %v23 = vpop.permute.xlu0 %22
    %vm24 = vcmask 7168
    %s25 = scalar_lea.vmem %s1, 3
    %26 = vst.msk [vmem:[%s25] ss:$8 sm:$0x3] %vm24, %v23
    %v27 = vld [vmem:[#allocation0] sm:$0x3]
    %28 = vrot.lane.b32.xlu0 %v27, 124
    %v29 = vpop.permute.xlu0 %28
    %vm30 = vcmask 7168
    %s31 = scalar_lea.vmem %s1, 4
    %32 = vst.msk [vmem:[%s31] ss:$8 sm:$0x3] %vm30, %v29
    %v33 = vld [vmem:[#allocation0] sm:$0x3]
    %34 = vrot.lane.b32.xlu0 %v33, 123
    %v35 = vpop.permute.xlu0 %34
    %vm36 = vcmask 7168
    %s37 = scalar_lea.vmem %s1, 5
    %38 = vst.msk [vmem:[%s37] ss:$8 sm:$0x3] %vm36, %v35
    %v39 = vld [vmem:[#allocation0] sm:$0x3]
    %40 = vrot.lane.b32.xlu0 %v39, 122
    %v41 = vpop.permute.xlu0 %40
    %vm42 = vcmask 7168
    %s43 = scalar_lea.vmem %s1, 6
    %44 = vst.msk [vmem:[%s43] ss:$8 sm:$0x3] %vm42, %v41
    %v45 = vld [vmem:[#allocation0] sm:$0x3]
    %46 = vrot.lane.b32.xlu0 %v45, 121
    %v47 = vpop.permute.xlu0 %46
    %vm48 = vcmask 7168
    %s49 = scalar_lea.vmem %s1, 7
    %50 = vst.msk [vmem:[%s49] ss:$8 sm:$0x3] %vm48, %v47

// kernel: invariant_embedding.1
$region0: #{invariant_embedding.1}
  #allocation0 [shape = 'u32[]', space=smem, size = 0x4, offset = 0x4, fixed_abs, tag = 'smem constant byte address 0x4 - core index']
  #allocation1 [shape = 'u32[72,128]{1,0:T(1,128)}', space=vmem, size = 0x9000, scoped, tag = 'internal scratch']
  %s0 = inlined_call_operand.vmem [shape: s32[16,1], index: 0, kind: input, shape index: {}]
  %s1 = inlined_call_operand.vmem [shape: s32[16,1], index: 1, kind: input, shape index: {}]
  %s2 = inlined_call_operand.vmem [shape: s32[16,8], index: 2, kind: input, shape index: {}]
  %s3 = inlined_call_operand.vmem [shape: f32[16,8], index: 3, kind: input, shape index: {}]
  %s4 = inlined_call_operand.vmem [shape: f32[8,32], index: 4, kind: input, shape index: {}]
  %s5 = inlined_call_operand.vmem [shape: f32[6,32], index: 5, kind: input, shape index: {}]
  %s6 = inlined_call_operand.vmem [shape: f32[16,32], index: 6, kind: input, shape index: {}]
  %s7 = inlined_call_operand.vmem [shape: f32[8,32], index: 7, kind: input, shape index: {}]
  %s8 = inlined_call_operand.vmem [shape: f32[1,32], index: 8, kind: input, shape index: {}]
  %s9 = inlined_call_operand.vmem [shape: f32[32,32], index: 9, kind: input, shape index: {}]
  %s10 = inlined_call_operand.vmem [shape: f32[1,32], index: 10, kind: input, shape index: {}]
  %s11 = inlined_call_operand.vmem [shape: f32[16,1], index: 11, kind: input, shape index: {}]
  %s12 = inlined_call_operand.vmem [shape: f32[16,1], index: 12, kind: input, shape index: {}]
  %s13 = inlined_call_operand.vmem [shape: f32[16,1], index: 13, kind: input, shape index: {}]
  %s14 = inlined_call_operand.vmem [shape: f32[16,8], index: 14, kind: input, shape index: {}]
  %s15 = inlined_call_operand.vmem [shape: f32[16,8], index: 15, kind: input, shape index: {}]
  %s16 = inlined_call_operand.vmem [shape: f32[16,8], index: 16, kind: input, shape index: {}]
  %s17 = inlined_call_operand.vmem [shape: s32[16,40], index: 17, kind: input, shape index: {}]
  %s18 = inlined_call_operand.vmem [shape: s32[1,40], index: 18, kind: input, shape index: {}]
  %s19 = inlined_call_operand.vmem [shape: f32[16,40], index: 19, kind: input, shape index: {}]
  %s20 = inlined_call_operand.vmem [shape: f32[8,64], index: 20, kind: input, shape index: {}]
  %s21 = inlined_call_operand.vmem [shape: f32[1,64], index: 21, kind: input, shape index: {}]
  %s22 = inlined_call_operand.vmem [shape: f32[1,64], index: 22, kind: input, shape index: {}]
  %s23 = inlined_call_operand.vmem [shape: f32[40,128], index: 23, kind: input, shape index: {}]
  %s24 = inlined_call_operand.vmem [shape: f32[40,128], index: 24, kind: input, shape index: {}]
  %s25 = inlined_call_operand.vmem [shape: f32[64,128], index: 25, kind: input, shape index: {}]
  %s26 = inlined_call_operand.vmem [shape: f32[1,128], index: 26, kind: input, shape index: {}]
  %s27 = inlined_call_operand.hbm [shape: f32[16,32], index: 27, kind: output, shape index: {0}]
  %s28 = inlined_call_operand.vmem [shape: f32[16,128], index: 28, kind: output, shape index: {1}]
  %29 = xla_tuple %s27, %s28
  %s30 = sld [smem:[#allocation0]]
  $region126: #{invariant_embedding.1} parent=0
    _
  %s32 = ssub.s32 1, %s30
  %s33 = scalar_select 0, %s32, %s30
  $region1: #{invariant_embedding.1} parent=0
    #allocation2 [shape = 'u8[8192]{0}', space=vmem, size = 0x2000, scoped, tag = 'output window, operand 0, single buffered']
    #allocation3 [shape = 's32[1]{0}', space=sflag, size = 0x4, scoped, tag = 'scoped memory for invariant_embedding.1']
    %34 = vsyncpa [#allocation3], 0
    // Predicated region
    $region2: #{invariant_embedding.1} parent=1 // pred_check
      _
    $region3: #{invariant_embedding.1} parent=1 // pred_check_branch
      %36 = sbr.rel (0) target = $region5
    $region4: #{invariant_embedding.1} parent=1 // pred_region
      _
    $region5: #{invariant_embedding.1} parent=1 // pred_fallthru
      _
    // Predicated region
    $region6: #{invariant_embedding.1} parent=1 // pred_check
      _
    $region7: #{invariant_embedding.1} parent=1 // pred_check_branch
      %38 = sbr.rel (0) target = $region9
    $region8: #{invariant_embedding.1} parent=1 // pred_region
      _
    $region9: #{invariant_embedding.1} parent=1 // pred_fallthru
      _
    // Predicated region
    $region10: #{invariant_embedding.1} parent=1 // pred_check
      _
    $region11: #{invariant_embedding.1} parent=1 // pred_check_branch
      %40 = sbr.rel (0) target = $region13
    $region12: #{invariant_embedding.1} parent=1 // pred_region
      _
    $region13: #{invariant_embedding.1} parent=1 // pred_fallthru
      _
    // Predicated region
    $region14: #{invariant_embedding.1} parent=1 // pred_check
      _
    $region15: #{invariant_embedding.1} parent=1 // pred_check_branch
      %42 = sbr.rel (0) target = $region17
    $region16: #{invariant_embedding.1} parent=1 // pred_region
      _
    $region17: #{invariant_embedding.1} parent=1 // pred_fallthru
      _
    // Predicated region
    $region18: #{invariant_embedding.1} parent=1 // pred_check
      _
    $region19: #{invariant_embedding.1} parent=1 // pred_check_branch
      %44 = sbr.rel (0) target = $region21
    $region20: #{invariant_embedding.1} parent=1 // pred_region
      _
    $region21: #{invariant_embedding.1} parent=1 // pred_fallthru
      _
    // Predicated region
    $region22: #{invariant_embedding.1} parent=1 // pred_check
      _
    $region23: #{invariant_embedding.1} parent=1 // pred_check_branch
      %46 = sbr.rel (0) target = $region25
    $region24: #{invariant_embedding.1} parent=1 // pred_region
      _
    $region25: #{invariant_embedding.1} parent=1 // pred_fallthru
      _
    // Predicated region
    $region26: #{invariant_embedding.1} parent=1 // pred_check
      _
    $region27: #{invariant_embedding.1} parent=1 // pred_check_branch
      %48 = sbr.rel (0) target = $region29
    $region28: #{invariant_embedding.1} parent=1 // pred_region
      _
    $region29: #{invariant_embedding.1} parent=1 // pred_fallthru
      _
    // Predicated region
    $region30: #{invariant_embedding.1} parent=1 // pred_check
      _
    $region31: #{invariant_embedding.1} parent=1 // pred_check_branch
      %50 = sbr.rel (0) target = $region33
    $region32: #{invariant_embedding.1} parent=1 // pred_region
      _
    $region33: #{invariant_embedding.1} parent=1 // pred_fallthru
      _
    // Predicated region
    $region34: #{invariant_embedding.1} parent=1 // pred_check
      _
    $region35: #{invariant_embedding.1} parent=1 // pred_check_branch
      %52 = sbr.rel (0) target = $region37
    $region36: #{invariant_embedding.1} parent=1 // pred_region
      _
    $region37: #{invariant_embedding.1} parent=1 // pred_fallthru
      _
    // Predicated region
    $region38: #{invariant_embedding.1} parent=1 // pred_check
      _
    $region39: #{invariant_embedding.1} parent=1 // pred_check_branch
      %54 = sbr.rel (0) target = $region41
    $region40: #{invariant_embedding.1} parent=1 // pred_region
      _
    $region41: #{invariant_embedding.1} parent=1 // pred_fallthru
      _
    // Predicated region
    $region42: #{invariant_embedding.1} parent=1 // pred_check
      _
    $region43: #{invariant_embedding.1} parent=1 // pred_check_branch
      %56 = sbr.rel (0) target = $region45
    $region44: #{invariant_embedding.1} parent=1 // pred_region
      _
    $region45: #{invariant_embedding.1} parent=1 // pred_fallthru
      _
    // Predicated region
    $region46: #{invariant_embedding.1} parent=1 // pred_check
      _
    $region47: #{invariant_embedding.1} parent=1 // pred_check_branch
      %58 = sbr.rel (0) target = $region49
    $region48: #{invariant_embedding.1} parent=1 // pred_region
      _
    $region49: #{invariant_embedding.1} parent=1 // pred_fallthru
      _
    // Predicated region
    $region50: #{invariant_embedding.1} parent=1 // pred_check
      _
    $region51: #{invariant_embedding.1} parent=1 // pred_check_branch
      %60 = sbr.rel (0) target = $region53
    $region52: #{invariant_embedding.1} parent=1 // pred_region
      _
    $region53: #{invariant_embedding.1} parent=1 // pred_fallthru
      _
    // Predicated region
    $region54: #{invariant_embedding.1} parent=1 // pred_check
      _
    $region55: #{invariant_embedding.1} parent=1 // pred_check_branch
      %62 = sbr.rel (0) target = $region57
    $region56: #{invariant_embedding.1} parent=1 // pred_region
      _
    $region57: #{invariant_embedding.1} parent=1 // pred_fallthru
      _
    // Predicated region
    $region58: #{invariant_embedding.1} parent=1 // pred_check
      _
    $region59: #{invariant_embedding.1} parent=1 // pred_check_branch
      %64 = sbr.rel (0) target = $region61
    $region60: #{invariant_embedding.1} parent=1 // pred_region
      _
    $region61: #{invariant_embedding.1} parent=1 // pred_fallthru
      _
    // Predicated region
    $region62: #{invariant_embedding.1} parent=1 // pred_check
      _
    $region63: #{invariant_embedding.1} parent=1 // pred_check_branch
      %66 = sbr.rel (0) target = $region65
    $region64: #{invariant_embedding.1} parent=1 // pred_region
      _
    $region65: #{invariant_embedding.1} parent=1 // pred_fallthru
      _
    // Predicated region
    $region66: #{invariant_embedding.1} parent=1 // pred_check
      _
    $region67: #{invariant_embedding.1} parent=1 // pred_check_branch
      %68 = sbr.rel (0) target = $region69
    $region68: #{invariant_embedding.1} parent=1 // pred_region
      _
    $region69: #{invariant_embedding.1} parent=1 // pred_fallthru
      _
    // Predicated region
    $region70: #{invariant_embedding.1} parent=1 // pred_check
      _
    $region71: #{invariant_embedding.1} parent=1 // pred_check_branch
      %70 = sbr.rel (0) target = $region73
    $region72: #{invariant_embedding.1} parent=1 // pred_region
      _
    $region73: #{invariant_embedding.1} parent=1 // pred_fallthru
      _
    // Predicated region
    $region74: #{invariant_embedding.1} parent=1 // pred_check
      _
    $region75: #{invariant_embedding.1} parent=1 // pred_check_branch
      %72 = sbr.rel (0) target = $region77
    $region76: #{invariant_embedding.1} parent=1 // pred_region
      _
    $region77: #{invariant_embedding.1} parent=1 // pred_fallthru
      _
    // Predicated region
    $region78: #{invariant_embedding.1} parent=1 // pred_check
      _
    $region79: #{invariant_embedding.1} parent=1 // pred_check_branch
      %74 = sbr.rel (0) target = $region81
    $region80: #{invariant_embedding.1} parent=1 // pred_region
      _
    $region81: #{invariant_embedding.1} parent=1 // pred_fallthru
      _
    // Predicated region
    $region82: #{invariant_embedding.1} parent=1 // pred_check
      _
    $region83: #{invariant_embedding.1} parent=1 // pred_check_branch
      %76 = sbr.rel (0) target = $region85
    $region84: #{invariant_embedding.1} parent=1 // pred_region
      _
    $region85: #{invariant_embedding.1} parent=1 // pred_fallthru
      _
    // Predicated region
    $region86: #{invariant_embedding.1} parent=1 // pred_check
      _
    $region87: #{invariant_embedding.1} parent=1 // pred_check_branch
      %78 = sbr.rel (0) target = $region89
    $region88: #{invariant_embedding.1} parent=1 // pred_region
      _
    $region89: #{invariant_embedding.1} parent=1 // pred_fallthru
      _
    // Predicated region
    $region90: #{invariant_embedding.1} parent=1 // pred_check
      _
    $region91: #{invariant_embedding.1} parent=1 // pred_check_branch
      %80 = sbr.rel (0) target = $region93
    $region92: #{invariant_embedding.1} parent=1 // pred_region
      _
    $region93: #{invariant_embedding.1} parent=1 // pred_fallthru
      _
    // Predicated region
    $region94: #{invariant_embedding.1} parent=1 // pred_check
      _
    $region95: #{invariant_embedding.1} parent=1 // pred_check_branch
      %82 = sbr.rel (0) target = $region97
    $region96: #{invariant_embedding.1} parent=1 // pred_region
      _
    $region97: #{invariant_embedding.1} parent=1 // pred_fallthru
      _
    // Predicated region
    $region98: #{invariant_embedding.1} parent=1 // pred_check
      _
    $region99: #{invariant_embedding.1} parent=1 // pred_check_branch
      %84 = sbr.rel (0) target = $region101
    $region100: #{invariant_embedding.1} parent=1 // pred_region
      _
    $region101: #{invariant_embedding.1} parent=1 // pred_fallthru
      _
    // Predicated region
    $region102: #{invariant_embedding.1} parent=1 // pred_check
      _
    $region103: #{invariant_embedding.1} parent=1 // pred_check_branch
      %86 = sbr.rel (0) target = $region105
    $region104: #{invariant_embedding.1} parent=1 // pred_region
      _
    $region105: #{invariant_embedding.1} parent=1 // pred_fallthru
      _
    // Predicated region
    $region106: #{invariant_embedding.1} parent=1 // pred_check
      _
    $region107: #{invariant_embedding.1} parent=1 // pred_check_branch
      %88 = sbr.rel (0) target = $region109
    $region108: #{invariant_embedding.1} parent=1 // pred_region
      _
    $region109: #{invariant_embedding.1} parent=1 // pred_fallthru
      _
    %v89 = vld [vmem:[%s0] sm:$0xff]
    %v90 = vld [vmem:[%s0 + $0x8] sm:$0xff]
    %v91 = vlaneseq
    %v92 = vand.u32 %v91, 127
    %93 = vset.pattern.permute.xlu0 0
    %94 = vperm.xlu0 %93, %v89
    %v95 = vpop.permute.xlu0 %94
    %96 = vset.pattern.permute.xlu0 0
    %97 = vperm.xlu0 %96, %v90
    %v98 = vpop.permute.xlu0 %97
    %vm99 = vcmp.eq.s32.totalorder %v95, %v92
    %vm100 = vcmp.eq.s32.totalorder %v98, %v92
    %v101 = vsel %vm99, 1, 0
    %v102 = vsel %vm100, 1, 0
    %v103 = vcvt.s32.f32 %v101
    %v104 = vcvt.s32.f32 %v102
    %v105 = vld [vmem:[%s1] sm:$0xff]
    %v106 = vld [vmem:[%s1 + $0x8] sm:$0xff]
    %107 = vset.pattern.permute.xlu0 0
    %108 = vperm.xlu0 %107, %v105
    %v109 = vpop.permute.xlu0 %108
    %110 = vset.pattern.permute.xlu0 0
    %111 = vperm.xlu0 %110, %v106
    %v112 = vpop.permute.xlu0 %111
    %vm113 = vcmp.eq.s32.totalorder %v109, %v92
    %vm114 = vcmp.eq.s32.totalorder %v112, %v92
    %v115 = vsel %vm113, 1, 0
    %v116 = vsel %vm114, 1, 0
    %v117 = vcvt.s32.f32 %v115
    %v118 = vcvt.s32.f32 %v116
    %v119 = vld [vmem:[%s2] sm:$0xff]
    %v120 = vld [vmem:[%s2 + $0x8] sm:$0xff]
    %vm121 = vcmask 64512
    %v122 = vsel %vm121, %v119, 0
    %v123 = vand.u32 %v122, 65535
    %v124 = vshrl.u32 %v122, 16
    %v125 = vcvt.s32.f32 %v123
    %v126 = vcvt.s32.f32 %v124
    %127 = vadd.xlane.f32.xlu0 %v125
    %v128 = vpop.xlane.xlu0 %127
    %129 = vadd.xlane.f32.xlu0 %v126
    %v130 = vpop.xlane.xlu0 %129
    %v131 = vcvt.f32.s32 %v128
    %v132 = vcvt.f32.s32 %v130
    %v133 = vshll.u32 %v132, 16
    %v134 = vadd.s32 %v133, %v131
    %v135 = vsel %vm121, %v120, 0
    %v136 = vand.u32 %v135, 65535
    %v137 = vshrl.u32 %v135, 16
    %v138 = vcvt.s32.f32 %v136
    %v139 = vcvt.s32.f32 %v137
    %140 = vadd.xlane.f32.xlu0 %v138
    %v141 = vpop.xlane.xlu0 %140
    %142 = vadd.xlane.f32.xlu0 %v139
    %v143 = vpop.xlane.xlu0 %142
    %v144 = vcvt.f32.s32 %v141
    %v145 = vcvt.f32.s32 %v143
    %v146 = vshll.u32 %v145, 16
    %v147 = vadd.s32 %v146, %v144
    %vm148 = vcmp.eq.s32.totalorder %v134, %v92
    %vm149 = vcmp.eq.s32.totalorder %v147, %v92
    %v150 = vsel %vm148, 1, 0
    %v151 = vsel %vm149, 1, 0
    %v152 = vcvt.s32.f32 %v150
    %v153 = vcvt.s32.f32 %v151
    %v154 = vld [vmem:[%s4] sm:$0xff]
    %v155 = vld [vmem:[%s5] sm:$0x3f]
    %vm156 = vcmask 48128
    %v158 = vsel %vm156, %v117, 0
    %v161 = vsel %vm156, %v118, 0
    %vm163 = vcmask 1045504
    %v165 = vsel %vm163, %v155, 0
    %167 = vmatpush.msra.mxu0 0.0
    %168 = vmatpush.msra.mxu0 0.0
    %169 = vmatpush.msra.mxu0 0.0
    %170 = vmatpush.msra.mxu0 0.0
    %171 = vmatpush.msra.mxu0 0.0
    %172 = vmatpush.msra.mxu0 0.0
    %173 = vmatpush.msra.mxu0 0.0
    %174 = vmatpush.msra.mxu0 0.0
    %175 = vmatpush.msra.mxu0 0.0
    %176 = vmatpush.msra.mxu0 0.0
    %177 = vmatpush.msra.mxu0 0.0
    %178 = vmatpush.msra.mxu0 0.0
    %179 = vmatpush.msra.mxu0 0.0
    %180 = vmatpush.msra.mxu0 0.0
    %181 = vmatpush.msra.mxu0 0.0
    %182 = vmatpush.msra.mxu0 %v165
    %183 = vmatmul.f32.gmra.mxu0 %v158
    %v184 = vpop.f32.mrf.mxu0
    %v185 = vadd.f32 0.0, %v184
    %186 = vmatmul.f32.gmra.mxu0 %v161
    %v187 = vpop.f32.mrf.mxu0
    %v188 = vadd.f32 0.0, %v187
    %189 = vdwg.mxu0
    %v191 = vsel %vm121, %v103, 0
    %v194 = vsel %vm121, %v104, 0
    %196 = vmatpush.msra.mxu0 0.0
    %197 = vmatpush.msra.mxu0 0.0
    %198 = vmatpush.msra.mxu0 0.0
    %199 = vmatpush.msra.mxu0 0.0
    %200 = vmatpush.msra.mxu0 0.0
    %201 = vmatpush.msra.mxu0 0.0
    %202 = vmatpush.msra.mxu0 0.0
    %203 = vmatpush.msra.mxu0 0.0
    %204 = vmatpush.msra.mxu0 0.0
    %205 = vmatpush.msra.mxu0 0.0
    %206 = vmatpush.msra.mxu0 0.0
    %207 = vmatpush.msra.mxu0 0.0
    %208 = vmatpush.msra.mxu0 0.0
    %209 = vmatpush.msra.mxu0 0.0
    %210 = vmatpush.msra.mxu0 0.0
    %211 = vmatpush.msra.mxu0 %v154
    %212 = vmatmul.f32.gmra.mxu0 %v191
    %v213 = vpop.f32.mrf.mxu0
    %v214 = vadd.f32 %v185, %v213
    %215 = vmatmul.f32.gmra.mxu0 %v194
    %v216 = vpop.f32.mrf.mxu0
    %v217 = vadd.f32 %v188, %v216
    %218 = vdwg.mxu0
    %v219 = vld [vmem:[%s6] sm:$0xff]
    %v220 = vld [vmem:[%s6 + $0x8] sm:$0xff]
    %vm221 = vcmask 130048
    %v223 = vsel %vm221, %v152, 0
    %v226 = vsel %vm221, %v153, 0
    %228 = vmatpush.msra.mxu0 0.0
    %229 = vmatpush.msra.mxu0 0.0
    %230 = vmatpush.msra.mxu0 0.0
    %231 = vmatpush.msra.mxu0 0.0
    %232 = vmatpush.msra.mxu0 0.0
    %233 = vmatpush.msra.mxu0 0.0
    %234 = vmatpush.msra.mxu0 0.0
    %235 = vmatpush.msra.mxu0 0.0
    %236 = vmatpush.msra.mxu0 0.0
    %237 = vmatpush.msra.mxu0 0.0
    %238 = vmatpush.msra.mxu0 0.0
    %239 = vmatpush.msra.mxu0 0.0
    %240 = vmatpush.msra.mxu0 0.0
    %241 = vmatpush.msra.mxu0 0.0
    %242 = vmatpush.msra.mxu0 %v220
    %243 = vmatpush.msra.mxu0 %v219
    %244 = vmatmul.f32.gmra.mxu0 %v223
    %v245 = vpop.f32.mrf.mxu0
    %v246 = vadd.f32 0.0, %v245
    %247 = vmatmul.f32.gmra.mxu0 %v226
    %v248 = vpop.f32.mrf.mxu0
    %v249 = vadd.f32 0.0, %v248
    %250 = vdwg.mxu0
    %v251 = vadd.f32 %v214, %v246
    %v252 = vadd.f32 %v217, %v249
    %v253 = vld [vmem:[%s3] sm:$0xff]
    %v254 = vld [vmem:[%s3 + $0x8] sm:$0xff]
    %v255 = vld [vmem:[%s7] sm:$0xff]
    %v257 = vsel %vm121, %v253, 0
    %v260 = vsel %vm121, %v254, 0
    %262 = vmatpush.msra.mxu0 0.0
    %263 = vmatpush.msra.mxu0 0.0
    %264 = vmatpush.msra.mxu0 0.0
    %265 = vmatpush.msra.mxu0 0.0
    %266 = vmatpush.msra.mxu0 0.0
    %267 = vmatpush.msra.mxu0 0.0
    %268 = vmatpush.msra.mxu0 0.0
    %269 = vmatpush.msra.mxu0 0.0
    %270 = vmatpush.msra.mxu0 0.0
    %271 = vmatpush.msra.mxu0 0.0
    %272 = vmatpush.msra.mxu0 0.0
    %273 = vmatpush.msra.mxu0 0.0
    %274 = vmatpush.msra.mxu0 0.0
    %275 = vmatpush.msra.mxu0 0.0
    %276 = vmatpush.msra.mxu0 0.0
    %277 = vmatpush.msra.mxu0 %v255
    %278 = vmatmul.f32.gmra.mxu0 %v257
    %v279 = vpop.f32.mrf.mxu0
    %v280 = vadd.f32 0.0, %v279
    %281 = vmatmul.f32.gmra.mxu0 %v260
    %v282 = vpop.f32.mrf.mxu0
    %v283 = vadd.f32 0.0, %v282
    %284 = vdwg.mxu0
    %v285 = vadd.f32 %v251, %v280
    %v286 = vadd.f32 %v252, %v283
    %v287 = vld [vmem:[%s8] sm:$0x1]
    %v289 = vperm.slane %v287, 0
    %v291 = vadd.f32 %v285, %v289
    %v292 = vadd.f32 %v286, %v289
    %v293 = vxor.u32 %v291, 2147483648
    %v294 = vxor.u32 %v292, 2147483648
    %v295 = vmul.f32 %v293, 1.442695
    %v296 = vpow.pop %v295
    %v297 = vmul.f32 %v294, 1.442695
    %v298 = vpow.pop %v297
    %v299 = vadd.f32 %v296, 1.0
    %v300 = vadd.f32 %v298, 1.0
    %v301 = vrcp.pop %v299
    %v302 = vmul.f32 %v299, %v301
    %v303 = vsub.f32 1.0, %v302
    %v304 = vmul.f32 %v301, %v303
    %v305 = vadd.f32 %v301, %v304
    %vm306 = vweird.f32 %v299
    %vm307 = vweird.f32 %v301
    %vm308 = vmor %vm306, %vm307
    %v309 = vsel %vm308, %v301, %v305
    %v310 = vand.u32 2147483647, %v299
    %vm311 = vcmp.eq.f32.partialorder %v310, 8.507059e+37
    %v312 = vand.u32 %v299, 2147483648
    %v313 = vor.u32 1.1754944e-38, %v312
    %v314 = vsel %vm311, %v313, %v309
    %v315 = vmul.f32 1.0, %v314
    %v316 = vrcp.pop %v300
    %v317 = vmul.f32 %v300, %v316
    %v318 = vsub.f32 1.0, %v317
    %v319 = vmul.f32 %v316, %v318
    %v320 = vadd.f32 %v316, %v319
    %vm321 = vweird.f32 %v300
    %vm322 = vweird.f32 %v316
    %vm323 = vmor %vm321, %vm322
    %v324 = vsel %vm323, %v316, %v320
    %v325 = vand.u32 2147483647, %v300
    %vm326 = vcmp.eq.f32.partialorder %v325, 8.507059e+37
    %v327 = vand.u32 %v300, 2147483648
    %v328 = vor.u32 1.1754944e-38, %v327
    %v329 = vsel %vm326, %v328, %v324
    %v330 = vmul.f32 1.0, %v329
    %v331 = vmul.f32 %v291, %v315
    %v332 = vmul.f32 %v292, %v330
    %v333 = vld [vmem:[%s9] sm:$0xff]
    %v334 = vld [vmem:[%s9 + $0x8] sm:$0xff]
    %v335 = vld [vmem:[%s9 + $0x10] sm:$0xff]
    %v336 = vld [vmem:[%s9 + $0x18] sm:$0xff]
    %v337 = vld [vmem:[%s10] sm:$0x1]
    %v339 = vperm.slane %v337, 0
    %vm341 = vcmask 261120
    %v343 = vsel %vm341, %v331, 0
    %v346 = vsel %vm341, %v332, 0
    %348 = vmatpush.msra.mxu0 0.0
    %349 = vmatpush.msra.mxu0 0.0
    %350 = vmatpush.msra.mxu0 0.0
    %351 = vmatpush.msra.mxu0 0.0
    %352 = vmatpush.msra.mxu0 0.0
    %353 = vmatpush.msra.mxu0 0.0
    %354 = vmatpush.msra.mxu0 0.0
    %355 = vmatpush.msra.mxu0 0.0
    %356 = vmatpush.msra.mxu0 0.0
    %357 = vmatpush.msra.mxu0 0.0
    %358 = vmatpush.msra.mxu0 0.0
    %359 = vmatpush.msra.mxu0 0.0
    %360 = vmatpush.msra.mxu0 %v336
    %361 = vmatpush.msra.mxu0 %v335
    %362 = vmatpush.msra.mxu0 %v334
    %363 = vmatpush.msra.mxu0 %v333
    %364 = vmatmul.f32.gmra.mxu0 %v343
    %v365 = vpop.f32.mrf.mxu0
    %v366 = vadd.f32 %v339, %v365
    %367 = vmatmul.f32.gmra.mxu0 %v346
    %v368 = vpop.f32.mrf.mxu0
    %v369 = vadd.f32 %v339, %v368
    %370 = vdwg.mxu0
    %371 = vst.msk [vmem:[#allocation2] sm:$0xff] %vm341, %v366
    %372 = vst.msk [vmem:[#allocation2 + $0x8] sm:$0xff] %vm341, %v369
    %v373 = vld [vmem:[%s11] sm:$0xff]
    %v374 = vld [vmem:[%s11 + $0x8] sm:$0xff]
    %v375 = vld [vmem:[%s14] sm:$0xff]
    %v376 = vld [vmem:[%s14 + $0x8] sm:$0xff]
    %378 = vset.pattern.permute.xlu0 0
    %379 = vperm.xlu0 %378, %v373
    %v380 = vpop.permute.xlu0 %379
    %383 = vset.pattern.permute.xlu0 0
    %384 = vperm.xlu0 %383, %v374
    %v385 = vpop.permute.xlu0 %384
    %v387 = vsub.f32 %v380, %v375
    %v388 = vsub.f32 %v385, %v376
    %v389 = vld [vmem:[%s12] sm:$0xff]
    %v390 = vld [vmem:[%s12 + $0x8] sm:$0xff]
    %v391 = vld [vmem:[%s15] sm:$0xff]
    %v392 = vld [vmem:[%s15 + $0x8] sm:$0xff]
    %394 = vset.pattern.permute.xlu0 0
    %395 = vperm.xlu0 %394, %v389
    %v396 = vpop.permute.xlu0 %395
    %399 = vset.pattern.permute.xlu0 0
    %400 = vperm.xlu0 %399, %v390
    %v401 = vpop.permute.xlu0 %400
    %v403 = vsub.f32 %v396, %v391
    %v404 = vsub.f32 %v401, %v392
    %v405 = vld [vmem:[%s13] sm:$0xff]
    %v406 = vld [vmem:[%s13 + $0x8] sm:$0xff]
    %v407 = vld [vmem:[%s16] sm:$0xff]
    %v408 = vld [vmem:[%s16 + $0x8] sm:$0xff]
    %410 = vset.pattern.permute.xlu0 0
    %411 = vperm.xlu0 %410, %v405
    %v412 = vpop.permute.xlu0 %411
    %415 = vset.pattern.permute.xlu0 0
    %416 = vperm.xlu0 %415, %v406
    %v417 = vpop.permute.xlu0 %416
    %v419 = vsub.f32 %v412, %v407
    %v420 = vsub.f32 %v417, %v408
    %v421 = vmul.f32 %v387, %v387
    %v422 = vmul.f32 %v388, %v388
    %v423 = vmul.f32 %v403, %v403
    %v424 = vmul.f32 %v404, %v404
    %v425 = vadd.f32 %v421, %v423
    %v426 = vadd.f32 %v422, %v424
    %v427 = vmul.f32 %v419, %v419
    %v428 = vmul.f32 %v420, %v420
    %v429 = vadd.f32 %v425, %v427
    %v430 = vadd.f32 %v426, %v428
    %v431 = vrsqrt.pop %v429
    %v432 = vmul.f32 %v431, %v429
    %v433 = vmul.f32 %v432, %v431
    %v434 = vmul.f32 0.5, %v433
    %v435 = vsub.f32 1.5, %v434
    %v436 = vmul.f32 %v431, %v435
    %v437 = vmul.f32 %v429, %v436
    %vm438 = vcmp.eq.f32.partialorder %v429, inf
    %v439 = vsel %vm438, %v429, %v437
    %vm440 = vcmp.eq.f32.partialorder %v429, 0.0
    %v441 = vand.u32 %v429, 2147483648
    %v442 = vsel %vm440, %v441, %v439
    %v443 = vrsqrt.pop %v430
    %v444 = vmul.f32 %v443, %v430
    %v445 = vmul.f32 %v444, %v443
    %v446 = vmul.f32 0.5, %v445
    %v447 = vsub.f32 1.5, %v446
    %v448 = vmul.f32 %v443, %v447
    %v449 = vmul.f32 %v430, %v448
    %vm450 = vcmp.eq.f32.partialorder %v430, inf
    %v451 = vsel %vm450, %v430, %v449
    %vm452 = vcmp.eq.f32.partialorder %v430, 0.0
    %v453 = vand.u32 %v430, 2147483648
    %v454 = vsel %vm452, %v453, %v451
    %v455 = vmin.f32 %v442, 5.0
    %v456 = vmin.f32 %v454, 5.0
    %v457 = vld [vmem:[%s20] sm:$0xff]
    %v459 = vsel %vm121, %v455, 0
    %v462 = vsel %vm121, %v456, 0
    %464 = vmatpush.msra.mxu0 0.0
    %465 = vmatpush.msra.mxu0 0.0
    %466 = vmatpush.msra.mxu0 0.0
    %467 = vmatpush.msra.mxu0 0.0
    %468 = vmatpush.msra.mxu0 0.0
    %469 = vmatpush.msra.mxu0 0.0
    %470 = vmatpush.msra.mxu0 0.0
    %471 = vmatpush.msra.mxu0 0.0
    %472 = vmatpush.msra.mxu0 0.0
    %473 = vmatpush.msra.mxu0 0.0
    %474 = vmatpush.msra.mxu0 0.0
    %475 = vmatpush.msra.mxu0 0.0
    %476 = vmatpush.msra.mxu0 0.0
    %477 = vmatpush.msra.mxu0 0.0
    %478 = vmatpush.msra.mxu0 0.0
    %479 = vmatpush.msra.mxu0 %v457
    %480 = vmatmul.f32.gmra.mxu0 %v459
    %v481 = vpop.f32.mrf.mxu0
    %v482 = vadd.f32 0.0, %v481
    %483 = vmatmul.f32.gmra.mxu0 %v462
    %v484 = vpop.f32.mrf.mxu0
    %v485 = vadd.f32 0.0, %v484
    %486 = vdwg.mxu0
    %v487 = vld [vmem:[%s21] sm:$0x1]
    %v489 = vperm.slane %v487, 0
    %v491 = vsub.f32 %v482, %v489
    %v492 = vsub.f32 %v485, %v489
    %v493 = vld [vmem:[%s22] sm:$0x1]
    %v495 = vperm.slane %v493, 0
    %v497 = vmul.f32 %v495, %v491
    %v498 = vmul.f32 %v495, %v492
    %v499 = vmul.f32 %v497, %v491
    %v500 = vmul.f32 %v498, %v492
    %v501 = vmul.f32 %v499, 1.442695
    %v502 = vpow.pop %v501
    %v503 = vmul.f32 %v500, 1.442695
    %v504 = vpow.pop %v503
    %v505 = vld [vmem:[%s17] sm:$0xff]
    %v506 = vld [vmem:[%s17 + $0x8] sm:$0xff]
    %v507 = vld [vmem:[%s18] sm:$0x1]
    %v508 = vperm.slane %v507, 0
    %vm509 = vcmp.eq.s32.totalorder %v505, %v508
    %vm510 = vcmp.eq.s32.totalorder %v506, %v508
    %v511 = vsel %vm509, 1, 0
    %v512 = vsel %vm510, 1, 0
    %v513 = vcvt.s32.f32 %v511
    %v514 = vcvt.s32.f32 %v512
    %v515 = vld [vmem:[%s23] sm:$0xff]
    %v516 = vld [vmem:[%s23 + $0x8] sm:$0xff]
    %v517 = vld [vmem:[%s23 + $0x10] sm:$0xff]
    %v518 = vld [vmem:[%s23 + $0x18] sm:$0xff]
    %v519 = vld [vmem:[%s23 + $0x20] sm:$0xff]
    %v520 = vld [vmem:[%s19] sm:$0xff]
    %v521 = vld [vmem:[%s19 + $0x8] sm:$0xff]
    %v522 = vld [vmem:[%s24] sm:$0xff]
    %v523 = vld [vmem:[%s24 + $0x8] sm:$0xff]
    %v524 = vld [vmem:[%s24 + $0x10] sm:$0xff]
    %v525 = vld [vmem:[%s24 + $0x18] sm:$0xff]
    %v526 = vld [vmem:[%s24 + $0x20] sm:$0xff]
    %vm527 = vcmask 326656
    %v529 = vsel %vm527, %v520, 0
    %v532 = vsel %vm527, %v521, 0
    %534 = vmatpush.msra.mxu0 0.0
    %535 = vmatpush.msra.mxu0 0.0
    %536 = vmatpush.msra.mxu0 0.0
    %537 = vmatpush.msra.mxu0 0.0
    %538 = vmatpush.msra.mxu0 0.0
    %539 = vmatpush.msra.mxu0 0.0
    %540 = vmatpush.msra.mxu0 0.0
    %541 = vmatpush.msra.mxu0 0.0
    %542 = vmatpush.msra.mxu0 0.0
    %543 = vmatpush.msra.mxu0 0.0
    %544 = vmatpush.msra.mxu0 0.0
    %545 = vmatpush.msra.mxu0 %v526
    %546 = vmatpush.msra.mxu0 %v525
    %547 = vmatpush.msra.mxu0 %v524
    %548 = vmatpush.msra.mxu0 %v523
    %549 = vmatpush.msra.mxu0 %v522
    %550 = vmatmul.f32.gmra.mxu0 %v529
    %v551 = vpop.f32.mrf.mxu0
    %v552 = vadd.f32 0.0, %v551
    %553 = vmatmul.f32.gmra.mxu0 %v532
    %v554 = vpop.f32.mrf.mxu0
    %v555 = vadd.f32 0.0, %v554
    %556 = vdwg.mxu0
    %v558 = vsel %vm527, %v513, 0
    %v561 = vsel %vm527, %v514, 0
    %563 = vmatpush.msra.mxu0 0.0
    %564 = vmatpush.msra.mxu0 0.0
    %565 = vmatpush.msra.mxu0 0.0
    %566 = vmatpush.msra.mxu0 0.0
    %567 = vmatpush.msra.mxu0 0.0
    %568 = vmatpush.msra.mxu0 0.0
    %569 = vmatpush.msra.mxu0 0.0
    %570 = vmatpush.msra.mxu0 0.0
    %571 = vmatpush.msra.mxu0 0.0
    %572 = vmatpush.msra.mxu0 0.0
    %573 = vmatpush.msra.mxu0 0.0
    %574 = vmatpush.msra.mxu0 %v519
    %575 = vmatpush.msra.mxu0 %v518
    %576 = vmatpush.msra.mxu0 %v517
    %577 = vmatpush.msra.mxu0 %v516
    %578 = vmatpush.msra.mxu0 %v515
    %579 = vmatmul.f32.gmra.mxu0 %v558
    %v580 = vpop.f32.mrf.mxu0
    %v581 = vadd.f32 %v552, %v580
    %582 = vmatmul.f32.gmra.mxu0 %v561
    %v583 = vpop.f32.mrf.mxu0
    %v584 = vadd.f32 %v555, %v583
    %585 = vdwg.mxu0
    %v586 = vld [vmem:[%s25] sm:$0xff]
    %v587 = vld [vmem:[%s25 + $0x8] sm:$0xff]
    %v588 = vld [vmem:[%s25 + $0x10] sm:$0xff]
    %v589 = vld [vmem:[%s25 + $0x18] sm:$0xff]
    %v590 = vld [vmem:[%s25 + $0x20] sm:$0xff]
    %v591 = vld [vmem:[%s25 + $0x28] sm:$0xff]
    %v592 = vld [vmem:[%s25 + $0x30] sm:$0xff]
    %v593 = vld [vmem:[%s25 + $0x38] sm:$0xff]
    %vm594 = vcmask 523264
    %v596 = vsel %vm594, %v502, 0
    %v599 = vsel %vm594, %v504, 0
    %601 = vmatpush.msra.mxu0 0.0
    %602 = vmatpush.msra.mxu0 0.0
    %603 = vmatpush.msra.mxu0 0.0
    %604 = vmatpush.msra.mxu0 0.0
    %605 = vmatpush.msra.mxu0 0.0
    %606 = vmatpush.msra.mxu0 0.0
    %607 = vmatpush.msra.mxu0 0.0
    %608 = vmatpush.msra.mxu0 0.0
    %609 = vmatpush.msra.mxu0 %v593
    %610 = vmatpush.msra.mxu0 %v592
    %611 = vmatpush.msra.mxu0 %v591
    %612 = vmatpush.msra.mxu0 %v590
    %613 = vmatpush.msra.mxu0 %v589
    %614 = vmatpush.msra.mxu0 %v588
    %615 = vmatpush.msra.mxu0 %v587
    %616 = vmatpush.msra.mxu0 %v586
    %617 = vmatmul.f32.gmra.mxu0 %v596
    %v618 = vpop.f32.mrf.mxu0
    %v619 = vadd.f32 0.0, %v618
    %620 = vmatmul.f32.gmra.mxu0 %v599
    %v621 = vpop.f32.mrf.mxu0
    %v622 = vadd.f32 0.0, %v621
    %623 = vdwg.mxu0
    %v624 = vadd.f32 %v581, %v619
    %v625 = vadd.f32 %v584, %v622
    %v626 = vld [vmem:[%s26] sm:$0x1]
    %v628 = vperm.slane %v626, 0
    %v630 = vadd.f32 %v624, %v628
    %v631 = vadd.f32 %v625, %v628
    %632 = vst [vmem:[%s28] sm:$0xff] %v630
    %633 = vst [vmem:[%s28 + $0x8] sm:$0xff] %v631
    // Predicated region
    $region110: #{invariant_embedding.1} parent=1 // pred_check
      _
    $region111: #{invariant_embedding.1} parent=1 // pred_check_branch
      %635 = sbr.rel (0) target = $region113
    $region112: #{invariant_embedding.1} parent=1 // pred_region
      %637 = vsyncadd [#allocation3], 0
      %s638 = sshll.u32 [#allocation2], 4
      %s639 = int_to_ptr.vmem [resolvable:$true] %s638
      %s640 = sshll.u32 %s27, 4
      %s641 = int_to_ptr.hbm [resolvable:$true] %s640
      %646 = dma.vmem_to_hbm [thread:$0]  %s639, 256, %s641, [#allocation3], 128, 128, 8
    $region113: #{invariant_embedding.1} parent=1 // pred_fallthru
      _
    // Predicated region
    $region114: #{invariant_embedding.1} parent=1 // pred_check
      _
    $region115: #{invariant_embedding.1} parent=1 // pred_check_branch
      %648 = sbr.rel (0) target = $region117
    $region116: #{invariant_embedding.1} parent=1 // pred_region
      _
    $region117: #{invariant_embedding.1} parent=1 // pred_fallthru
      _
    // Predicated region
    $region118: #{invariant_embedding.1} parent=1 // pred_check
      _
    $region119: #{invariant_embedding.1} parent=1 // pred_check_branch
      %650 = sbr.rel (0) target = $region121
    $region120: #{invariant_embedding.1} parent=1 // pred_region
      %652 = dma.done [#allocation3], 256
    $region121: #{invariant_embedding.1} parent=1 // pred_fallthru
      _
    // Predicated region
    $region122: #{invariant_embedding.1} parent=1 // pred_check
      _
    $region123: #{invariant_embedding.1} parent=1 // pred_check_branch
      %654 = sbr.rel (0) target = $region125
    $region124: #{invariant_embedding.1} parent=1 // pred_region
      _
    $region125: #{invariant_embedding.1} parent=1 // pred_fallthru
      _
    %655 = vsyncpa [#allocation3], 1

</llo_original>
